<compile_context>
chip_gen: v7x
topology: tpu7x:2x2x1
jax: 0.10.0
libtpu: 0.0.40
codegen_flags: <defaults>
</compile_context>

<pallas_src>
import functools

import jax
import jax.numpy as jnp
from jax.experimental import pallas as pl
from jax.experimental.pallas import tpu as pltpu


# ----------------------------------------------------------------------------
# Fused 3-layer MLP + softplus kernel
# ----------------------------------------------------------------------------
def _uncertainty_mlp_kernel(x_ref, w1_ref, b1_ref, w2_ref, b2_ref, w3_ref, b3_ref,
                            out_ref):
    # Layer 1: bf16 MXU matmul, f32 accumulation; bias + ReLU in f32 (VPU).
    x_bf = x_ref[...].astype(jnp.bfloat16)                               # (TM, D)
    h1 = jnp.dot(x_bf, w1_ref[...], preferred_element_type=jnp.float32)
    h1 = jnp.maximum(h1 + b1_ref[...], 0.0)                              # (TM, H)

    # Layer 2: bf16 MXU matmul, f32 accumulation; bias + ReLU in f32.
    h2 = jnp.dot(h1.astype(jnp.bfloat16), w2_ref[...],
                 preferred_element_type=jnp.float32)
    h2 = jnp.maximum(h2 + b2_ref[...], 0.0)                              # (TM, H)

    # Layer 3 (H -> 1): avoid a 1-wide MXU matmul; VPU multiply + XLU lane rowsum.
    z = jnp.sum(h2 * w3_ref[...], axis=1, keepdims=True) + b3_ref[0]     # (TM, 1)

    # Relayout to lane-dense (1, TM//128, 128) BEFORE the transcendental math so
    # softplus runs on full vregs and the store is an unmasked, lane-dense vst.
    zl = z.reshape(out_ref.shape)                                        # (1, TM//128, 128)
    out_ref[...] = jnp.maximum(zl, 0.0) + jnp.log1p(jnp.exp(-jnp.abs(zl)))


def _round_up(x: int, m: int) -> int:
    return ((x + m - 1) // m) * m


@functools.partial(jax.jit, static_argnames=("block_rows",))
def uncertainty_mlp(x, w1, b1, w2, b2, w3, b3, *, block_rows: int = 1024):
    """softplus(relu(relu(x@W1+b1)@W2+b2)@w3+b3) as one fused Pallas kernel.

    x: (N, D). Weights stored (in, out). Returns (N, 1) float32.
    """
    n, d = x.shape
    h = w1.shape[1]

    # MXU operands in bf16 (f32 accumulation in-kernel); everything else f32.
    w1_bf = w1.astype(jnp.bfloat16)
    w2_bf = w2.astype(jnp.bfloat16)
    b1_row = b1.reshape(1, h).astype(jnp.float32)
    b2_row = b2.reshape(1, h).astype(jnp.float32)
    w3_row = w3.reshape(1, h).astype(jnp.float32)   # (H,1) column -> lane-dense row
    b3_sc = b3.reshape(1).astype(jnp.float32)       # scalar, lives in SMEM

    # Row tile: multiple of 128 (lane-dense output relayout), large enough to
    # amortize per-grid-step overhead, but capped so N splits into >=2 grid
    # steps for v7x's two TensorCores when N is big enough.
    block_rows = max(128, _round_up(block_rows, 128))
    tm = max(128, min(block_rows,
                      _round_up(pl.cdiv(n, 2), 128),
                      _round_up(n, 128)))
    num_tiles = pl.cdiv(n, tm)          # last x block may be partial (no jnp.pad)
    groups = tm // 128                  # lane groups per output block

    out = pl.pallas_call(
        _uncertainty_mlp_kernel,
        # Lane-dense output, over-allocated to full tiles; sliced below (tiny).
        out_shape=jax.ShapeDtypeStruct((num_tiles, groups, 128), jnp.float32),
        grid=(num_tiles,),
        in_specs=[
            pl.BlockSpec((tm, d), lambda i: (i, 0)),   # x row tile (streamed, native dtype)
            pl.BlockSpec((d, h), lambda i: (0, 0)),    # W1 bf16 (grid-invariant, VMEM)
            pl.BlockSpec((1, h), lambda i: (0, 0)),    # b1
            pl.BlockSpec((h, h), lambda i: (0, 0)),    # W2 bf16
            pl.BlockSpec((1, h), lambda i: (0, 0)),    # b2
            pl.BlockSpec((1, h), lambda i: (0, 0)),    # w3 as a lane-dense f32 row
            pl.BlockSpec(memory_space=pltpu.MemorySpace.SMEM),   # b3 scalar in SMEM
        ],
        out_specs=pl.BlockSpec((1, groups, 128), lambda i: (i, 0, 0)),
        compiler_params=pltpu.CompilerParams(
            dimension_semantics=("parallel",)),        # megacore-shardable on v7x
    )(x, w1_bf, b1_row, w2_bf, b2_row, w3_row, b3_sc)

    # Row-major flatten of (num_tiles, groups, 128) restores input row order.
    return out.reshape(num_tiles * tm, 1)[:n]


# ----------------------------------------------------------------------------
# Module wrapper (parameters initialized like nn.Linear defaults, deterministic)
# ----------------------------------------------------------------------------
class UncertaintyEstimatorPallas:
    def __init__(self, input_dim: int, uncertainty_type: str = "aleatoric",
                 hidden_dim: int = 64, key=None):
        if uncertainty_type not in ("aleatoric", "epistemic"):
            # TODO(synk): 'both' branch (MC-dropout variance over num_samples) not
            # implemented — requires stochastic in-kernel dropout.
            raise NotImplementedError("only 'aleatoric'/'epistemic' implemented")
        self.uncertainty_type = uncertainty_type
        self.input_dim = input_dim
        self.hidden_dim = hidden_dim

        key = jax.random.PRNGKey(0) if key is None else key
        ks = jax.random.split(key, 6)

        def linear_init(kw, kb, fan_in, fan_out):
            bound = 1.0 / jnp.sqrt(jnp.float32(fan_in))
            w = jax.random.uniform(kw, (fan_in, fan_out), jnp.float32, -bound, bound)
            b = jax.random.uniform(kb, (fan_out,), jnp.float32, -bound, bound)
            return w, b

        self.w1, self.b1 = linear_init(ks[0], ks[1], input_dim, hidden_dim)
        self.w2, self.b2 = linear_init(ks[2], ks[3], hidden_dim, hidden_dim)
        self.w3, self.b3 = linear_init(ks[4], ks[5], hidden_dim, 1)
        # NOTE: for uncertainty_type == 'epistemic' the Dropout layers are identity
        # in eval mode, so the forward pass is identical to the aleatoric net.

    def __call__(self, x, num_samples: int = 10):
        return uncertainty_mlp(x, self.w1, self.b1, self.w2, self.b2,
                               self.w3, self.b3)

    # Pure-JAX reference (f32, HIGHEST precision) for correctness checking.
    def reference(self, x):
        hp = jax.lax.Precision.HIGHEST
        h1 = jnp.maximum(jnp.dot(x, self.w1, precision=hp) + self.b1, 0.0)
        h2 = jnp.maximum(jnp.dot(h1, self.w2, precision=hp) + self.b2, 0.0)
        z = jnp.dot(h2, self.w3, precision=hp) + self.b3
        return jnp.maximum(z, 0.0) + jnp.log1p(jnp.exp(-jnp.abs(z)))


# ----------------------------------------------------------------------------
if __name__ == "__main__":
    key = jax.random.PRNGKey(0)
    k_x, k_p = jax.random.split(key)

    input_dim, hidden_dim = 32, 64
    n = 200   # not a multiple of 128 -> exercises the partial last x block

    x = jax.random.normal(k_x, (n, input_dim), dtype=jnp.float32)

    model = UncertaintyEstimatorPallas(input_dim, uncertainty_type="aleatoric",
                                       hidden_dim=hidden_dim, key=k_p)
    u = model(x)
    jax.block_until_ready(u)

    assert u.shape == (n, 1), u.shape
    assert bool(jnp.all(jnp.isfinite(u)))
    assert bool(jnp.all(u >= 0.0))          # softplus output is non-negative

    ref = model.reference(x)
    assert bool(jnp.allclose(u, ref, atol=1e-2, rtol=1e-2)), (
        float(jnp.max(jnp.abs(u - ref))))

    print("KERNEL_OK")
</pallas_src>

<mosaic_0001>
module attributes {stable_mosaic.version = 11 : i64} {
  func.func @_uncertainty_mlp_kernel(%arg0: i32, %arg1: memref<128x32xf32, #tpu.memory_space<vmem>>, %arg2: memref<32x64xbf16, #tpu.memory_space<vmem>>, %arg3: memref<1x64xf32, #tpu.memory_space<vmem>>, %arg4: memref<64x64xbf16, #tpu.memory_space<vmem>>, %arg5: memref<1x64xf32, #tpu.memory_space<vmem>>, %arg6: memref<1x64xf32, #tpu.memory_space<vmem>>, %arg7: memref<1xf32, #tpu.memory_space<smem>>, %arg8: memref<1x1x128xf32, #tpu.memory_space<vmem>>) attributes {dimension_semantics = [#tpu.dimension_semantics<parallel>], iteration_bounds = array<i64: 2>, scalar_prefetch = 0 : i64, scratch_operands = 0 : i64, tpu.core_type = #tpu.core_type<tc>, window_params = [{transform_indices = @transform_0, window_bounds = array<i64: 128, 32>}, {pipeline_mode = #tpu.pipeline_mode<synchronous>, transform_indices = @transform_1, window_bounds = array<i64: 32, 64>}, {pipeline_mode = #tpu.pipeline_mode<synchronous>, transform_indices = @transform_2, window_bounds = array<i64: 1, 64>}, {pipeline_mode = #tpu.pipeline_mode<synchronous>, transform_indices = @transform_3, window_bounds = array<i64: 64, 64>}, {pipeline_mode = #tpu.pipeline_mode<synchronous>, transform_indices = @transform_4, window_bounds = array<i64: 1, 64>}, {pipeline_mode = #tpu.pipeline_mode<synchronous>, transform_indices = @transform_5, window_bounds = array<i64: 1, 64>}, {transform_indices = @transform_6, window_bounds = array<i64: 1>}, {transform_indices = @transform_7, window_bounds = array<i64: 1, 1, 128>}]} {
    %c0 = arith.constant 0 : index
    %c0_0 = arith.constant 0 : index
    %0 = vector.load %arg1[%c0, %c0_0] : memref<128x32xf32, #tpu.memory_space<vmem>>, vector<128x32xf32>
    %1 = arith.truncf %0 : vector<128x32xf32> to vector<128x32xbf16>
    %c0_1 = arith.constant 0 : index
    %c0_2 = arith.constant 0 : index
    %2 = vector.load %arg2[%c0_1, %c0_2] : memref<32x64xbf16, #tpu.memory_space<vmem>>, vector<32x64xbf16>
    %cst = arith.constant dense<0.000000e+00> : vector<128x64xf32>
    %3 = tpu.matmul %1, %2, %cst {dimension_numbers = #tpu.dot_dimension_numbers<[1], [0], [0], [1], [0, 0, 1, 1], [], []>} : vector<128x32xbf16>, vector<32x64xbf16>, vector<128x64xf32> -> vector<128x64xf32>
    %c0_3 = arith.constant 0 : index
    %c0_4 = arith.constant 0 : index
    %4 = vector.load %arg3[%c0_3, %c0_4] : memref<1x64xf32, #tpu.memory_space<vmem>>, vector<1x64xf32>
    %5 = vector.broadcast %4 : vector<1x64xf32> to vector<128x64xf32>
    %6 = arith.addf %3, %5 : vector<128x64xf32>
    %cst_5 = arith.constant 0.000000e+00 : f32
    %7 = vector.broadcast %cst_5 : f32 to vector<128x64xf32>
    %8 = arith.maximumf %6, %7 : vector<128x64xf32>
    %9 = arith.truncf %8 : vector<128x64xf32> to vector<128x64xbf16>
    %c0_6 = arith.constant 0 : index
    %c0_7 = arith.constant 0 : index
    %10 = vector.load %arg4[%c0_6, %c0_7] : memref<64x64xbf16, #tpu.memory_space<vmem>>, vector<64x64xbf16>
    %cst_8 = arith.constant dense<0.000000e+00> : vector<128x64xf32>
    %11 = tpu.matmul %9, %10, %cst_8 {dimension_numbers = #tpu.dot_dimension_numbers<[1], [0], [0], [1], [0, 0, 1, 1], [], []>} : vector<128x64xbf16>, vector<64x64xbf16>, vector<128x64xf32> -> vector<128x64xf32>
    %c0_9 = arith.constant 0 : index
    %c0_10 = arith.constant 0 : index
    %12 = vector.load %arg5[%c0_9, %c0_10] : memref<1x64xf32, #tpu.memory_space<vmem>>, vector<1x64xf32>
    %13 = vector.broadcast %12 : vector<1x64xf32> to vector<128x64xf32>
    %14 = arith.addf %11, %13 : vector<128x64xf32>
    %cst_11 = arith.constant 0.000000e+00 : f32
    %15 = vector.broadcast %cst_11 : f32 to vector<128x64xf32>
    %16 = arith.maximumf %14, %15 : vector<128x64xf32>
    %c0_12 = arith.constant 0 : index
    %c0_13 = arith.constant 0 : index
    %17 = vector.load %arg6[%c0_12, %c0_13] : memref<1x64xf32, #tpu.memory_space<vmem>>, vector<1x64xf32>
    %18 = vector.broadcast %17 : vector<1x64xf32> to vector<128x64xf32>
    %19 = arith.mulf %16, %18 : vector<128x64xf32>
    %cst_14 = arith.constant dense<0.000000e+00> : vector<128xf32>
    %20 = vector.multi_reduction <add>, %19, %cst_14 [1] : vector<128x64xf32> to vector<128xf32>
    %21 = vector.shape_cast %20 : vector<128xf32> to vector<128x1xf32>
    %c0_15 = arith.constant 0 : index
    %22 = memref.load %arg7[%c0_15] : memref<1xf32, #tpu.memory_space<smem>>
    %23 = vector.broadcast %22 : f32 to vector<128x1xf32>
    %24 = arith.addf %21, %23 : vector<128x1xf32>
    %25 = vector.shape_cast %24 : vector<128x1xf32> to vector<1x1x128xf32>
    %cst_16 = arith.constant 0.000000e+00 : f32
    %26 = vector.broadcast %cst_16 : f32 to vector<1x1x128xf32>
    %27 = arith.maximumf %25, %26 : vector<1x1x128xf32>
    %28 = math.absf %25 : vector<1x1x128xf32>
    %cst_17 = arith.constant 0.000000e+00 : f32
    %29 = vector.broadcast %cst_17 : f32 to vector<1x1x128xf32>
    %30 = arith.subf %29, %28 : vector<1x1x128xf32>
    %31 = math.exp %30 : vector<1x1x128xf32>
    %32 = math.log1p %31 : vector<1x1x128xf32>
    %33 = arith.addf %27, %32 : vector<1x1x128xf32>
    %c0_18 = arith.constant 0 : index
    %c0_19 = arith.constant 0 : index
    %c0_20 = arith.constant 0 : index
    %34 = vector.load %arg8[%c0_18, %c0_19, %c0_20] : memref<1x1x128xf32, #tpu.memory_space<vmem>>, vector<1x1x128xf32>
    tpu.vector_store %arg8[%c0_18, %c0_19, %c0_20], %33 {strides = array<i32>} : memref<1x1x128xf32, #tpu.memory_space<vmem>>, vector<1x1x128xf32>,
    return
  }
  func.func @transform_0(%arg0: i32) -> (i32, i32) {
    %c0_i32 = arith.constant 0 : i32
    %c0_i32_0 = arith.constant 0 : i32
    return %arg0, %c0_i32 : i32, i32
  }
  func.func @transform_1(%arg0: i32) -> (i32, i32) {
    %c0_i32 = arith.constant 0 : i32
    %c0_i32_0 = arith.constant 0 : i32
    %c0_i32_1 = arith.constant 0 : i32
    return %c0_i32, %c0_i32_0 : i32, i32
  }
  func.func @transform_2(%arg0: i32) -> (i32, i32) {
    %c0_i32 = arith.constant 0 : i32
    %c0_i32_0 = arith.constant 0 : i32
    %c0_i32_1 = arith.constant 0 : i32
    return %c0_i32, %c0_i32_0 : i32, i32
  }
  func.func @transform_3(%arg0: i32) -> (i32, i32) {
    %c0_i32 = arith.constant 0 : i32
    %c0_i32_0 = arith.constant 0 : i32
    %c0_i32_1 = arith.constant 0 : i32
    return %c0_i32, %c0_i32_0 : i32, i32
  }
  func.func @transform_4(%arg0: i32) -> (i32, i32) {
    %c0_i32 = arith.constant 0 : i32
    %c0_i32_0 = arith.constant 0 : i32
    %c0_i32_1 = arith.constant 0 : i32
    return %c0_i32, %c0_i32_0 : i32, i32
  }
  func.func @transform_5(%arg0: i32) -> (i32, i32) {
    %c0_i32 = arith.constant 0 : i32
    %c0_i32_0 = arith.constant 0 : i32
    %c0_i32_1 = arith.constant 0 : i32
    return %c0_i32, %c0_i32_0 : i32, i32
  }
  func.func @transform_6(%arg0: i32) -> i32 {
    %c0_i32 = arith.constant 0 : i32
    %c0_i32_0 = arith.constant 0 : i32
    return %c0_i32 : i32
  }
  func.func @transform_7(%arg0: i32) -> (i32, i32, i32) {
    %c0_i32 = arith.constant 0 : i32
    %c0_i32_0 = arith.constant 0 : i32
    %c0_i32_1 = arith.constant 0 : i32
    return %arg0, %c0_i32, %c0_i32_0 : i32, i32, i32
  }
}

</mosaic_0001>

<llo_original>
// kernel: uncertainty_mlp.1
$region0: #{uncertainty_mlp.1}
  #allocation0 [shape = 'u32[]', space=smem, size = 0x4, offset = 0x4, fixed_abs, tag = 'smem constant byte address 0x4 - core index']
  #allocation1 [shape = 'u32[144,128]{1,0:T(1,128)}', space=vmem, size = 0x12000, scoped, tag = 'internal scratch']
  #allocation2 [shape = 'f32[1]{0:T(128)S(6)}', space=smem, size = 0x200, scoped, tag = 'scoped memory for uncertainty_mlp.1']
  %s0 = inlined_call_operand.vmem [shape: f32[200,32], index: 0, kind: input, shape index: {}]
  %s1 = inlined_call_operand.vmem [shape: bf16[32,64], index: 1, kind: input, shape index: {}]
  %s2 = inlined_call_operand.vmem [shape: f32[1,64], index: 2, kind: input, shape index: {}]
  %s3 = inlined_call_operand.vmem [shape: bf16[64,64], index: 3, kind: input, shape index: {}]
  %s4 = inlined_call_operand.vmem [shape: f32[1,64], index: 4, kind: input, shape index: {}]
  %s5 = inlined_call_operand.vmem [shape: f32[1,64], index: 5, kind: input, shape index: {}]
  %s6 = inlined_call_operand.<no memory space> [shape: f32[1], index: 6, kind: input, shape index: {}]
  %s7 = inlined_call_operand.hbm [shape: f32[2,1,128], index: 7, kind: output, shape index: {}]
  %s8 = sld [smem:[#allocation0]]
  $region61: #{uncertainty_mlp.1} parent=0
    _
  %s10 = ssub.s32 1, %s8
  %s11 = scalar_select 0, %s10, %s8
  %12 = sst [smem:[#allocation2]] %s6
  $region1: #{uncertainty_mlp.1} parent=0
    #allocation3 [shape = 'u8[1024]{0}', space=vmem, size = 0x400, scoped, tag = 'output window, operand 0']
    #allocation4 [shape = 's32[2]{0}', space=sflag, size = 0x8, scoped, tag = 'scoped memory for uncertainty_mlp.1']
    %13 = vsyncpa [#allocation4], 0
    %s14 = scalar_lea.sflag [#allocation4], 1
    %15 = vsyncpa %s14, 0
    loop: start=0, step=1, limit=4
    $region2: #{uncertainty_mlp.1} parent=1 // loop_pre_header
      _
    $region3: #{uncertainty_mlp.1} parent=1 // loop_header
      %s17 = sphi 0, %s21
      %p18 = scmp.ge.s32.totalorder %s17, 4
      %s27 = sphi 0, %s29
      %s30 = sphi 0, %s27
      %s31 = sphi 0, %s30
      %s47 = sphi 0, %s31
      %s51 = sphi 0, %s51
      %s53 = sphi 0, %s51
      %s54 = sphi 0, %s53
      %s68 = sphi 0, %s54
      %s72 = sphi 0, %s72
      %s74 = sphi 0, %s72
      %s75 = sphi 0, %s74
      %s89 = sphi 0, %s75
      %s93 = sphi 0, %s93
      %s95 = sphi 0, %s93
      %s96 = sphi 0, %s95
      %s110 = sphi 0, %s96
      %s114 = sphi 0, %s114
      %s116 = sphi 0, %s114
      %s117 = sphi 0, %s116
      %s131 = sphi 0, %s117
      %s135 = sphi 0, %s135
      %s137 = sphi 0, %s135
      %s138 = sphi 0, %s137
      %s152 = sphi 0, %s138
      %s156 = sphi 0, %s156
      %s158 = sphi 0, %s156
      %s159 = sphi 0, %s158
      %s173 = sphi 0, %s159
      %s179 = sphi 0, %s181
      %s182 = sphi 0, %s179
      %s183 = sphi 0, %s182
      %s199 = sphi 0, %s183
    $region4: #{uncertainty_mlp.1} parent=1 // loop_header_branch
      %20 = sbr.rel (%p18) target = $region8
    $region5: #{uncertainty_mlp.1} parent=1 // loop_body
      %s22 = ssub.s32 %s17, 1
      %s23 = ssub.s32 %s17, 2
      %s24 = sadd.s32 %s17, 1
      %s25 = ssub.s32 %s17, %s24
      %p26 = scmp.eq.s32.totalorder %s25, 0
      %s28 = sadd.s32 %s27, 1
      %s29 = scalar_select %p26, %s27, %s28
      %p32 = pneg %p26
      %p33 = scmp.eq.s32.totalorder %s17, 1
      %p34 = por %p32, %p33
      %p35 = scmp.ne.s32.totalorder %s27, %s30
      %p36 = scmp.eq.s32.totalorder %s17, 0
      %p37 = por %p35, %p36
      %p38 = scmp.ne.s32.totalorder %s27, %s30
      %p39 = scmp.eq.s32.totalorder %s22, 1
      %p40 = por %p38, %p39
      %p41 = scmp.ne.s32.totalorder %s30, %s31
      %p42 = scmp.eq.s32.totalorder %s22, 0
      %p43 = por %p41, %p42
      %p44 = scmp.ne.s32.totalorder %s30, %s31
      %p45 = scmp.eq.s32.totalorder %s23, 1
      %p46 = por %p44, %p45
      %p48 = scmp.ne.s32.totalorder %s31, %s47
      %p49 = scmp.eq.s32.totalorder %s23, 0
      %p50 = por %p48, %p49
      %s52 = sadd.s32 %s51, 1
      %p55 = scmp.eq.s32.totalorder %s17, 1
      %p56 = scmp.ne.s32.totalorder %s51, %s53
      %p57 = scmp.eq.s32.totalorder %s17, 0
      %p58 = por %p56, %p57
      %p59 = scmp.ne.s32.totalorder %s51, %s53
      %p60 = scmp.eq.s32.totalorder %s22, 1
      %p61 = por %p59, %p60
      %p62 = scmp.ne.s32.totalorder %s53, %s54
      %p63 = scmp.eq.s32.totalorder %s22, 0
      %p64 = por %p62, %p63
      %p65 = scmp.ne.s32.totalorder %s53, %s54
      %p66 = scmp.eq.s32.totalorder %s23, 1
      %p67 = por %p65, %p66
      %p69 = scmp.ne.s32.totalorder %s54, %s68
      %p70 = scmp.eq.s32.totalorder %s23, 0
      %p71 = por %p69, %p70
      %s73 = sadd.s32 %s72, 1
      %p76 = scmp.eq.s32.totalorder %s17, 1
      %p77 = scmp.ne.s32.totalorder %s72, %s74
      %p78 = scmp.eq.s32.totalorder %s17, 0
      %p79 = por %p77, %p78
      %p80 = scmp.ne.s32.totalorder %s72, %s74
      %p81 = scmp.eq.s32.totalorder %s22, 1
      %p82 = por %p80, %p81
      %p83 = scmp.ne.s32.totalorder %s74, %s75
      %p84 = scmp.eq.s32.totalorder %s22, 0
      %p85 = por %p83, %p84
      %p86 = scmp.ne.s32.totalorder %s74, %s75
      %p87 = scmp.eq.s32.totalorder %s23, 1
      %p88 = por %p86, %p87
      %p90 = scmp.ne.s32.totalorder %s75, %s89
      %p91 = scmp.eq.s32.totalorder %s23, 0
      %p92 = por %p90, %p91
      %s94 = sadd.s32 %s93, 1
      %p97 = scmp.eq.s32.totalorder %s17, 1
      %p98 = scmp.ne.s32.totalorder %s93, %s95
      %p99 = scmp.eq.s32.totalorder %s17, 0
      %p100 = por %p98, %p99
      %p101 = scmp.ne.s32.totalorder %s93, %s95
      %p102 = scmp.eq.s32.totalorder %s22, 1
      %p103 = por %p101, %p102
      %p104 = scmp.ne.s32.totalorder %s95, %s96
      %p105 = scmp.eq.s32.totalorder %s22, 0
      %p106 = por %p104, %p105
      %p107 = scmp.ne.s32.totalorder %s95, %s96
      %p108 = scmp.eq.s32.totalorder %s23, 1
      %p109 = por %p107, %p108
      %p111 = scmp.ne.s32.totalorder %s96, %s110
      %p112 = scmp.eq.s32.totalorder %s23, 0
      %p113 = por %p111, %p112
      %s115 = sadd.s32 %s114, 1
      %p118 = scmp.eq.s32.totalorder %s17, 1
      %p119 = scmp.ne.s32.totalorder %s114, %s116
      %p120 = scmp.eq.s32.totalorder %s17, 0
      %p121 = por %p119, %p120
      %p122 = scmp.ne.s32.totalorder %s114, %s116
      %p123 = scmp.eq.s32.totalorder %s22, 1
      %p124 = por %p122, %p123
      %p125 = scmp.ne.s32.totalorder %s116, %s117
      %p126 = scmp.eq.s32.totalorder %s22, 0
      %p127 = por %p125, %p126
      %p128 = scmp.ne.s32.totalorder %s116, %s117
      %p129 = scmp.eq.s32.totalorder %s23, 1
      %p130 = por %p128, %p129
      %p132 = scmp.ne.s32.totalorder %s117, %s131
      %p133 = scmp.eq.s32.totalorder %s23, 0
      %p134 = por %p132, %p133
      %s136 = sadd.s32 %s135, 1
      %p139 = scmp.eq.s32.totalorder %s17, 1
      %p140 = scmp.ne.s32.totalorder %s135, %s137
      %p141 = scmp.eq.s32.totalorder %s17, 0
      %p142 = por %p140, %p141
      %p143 = scmp.ne.s32.totalorder %s135, %s137
      %p144 = scmp.eq.s32.totalorder %s22, 1
      %p145 = por %p143, %p144
      %p146 = scmp.ne.s32.totalorder %s137, %s138
      %p147 = scmp.eq.s32.totalorder %s22, 0
      %p148 = por %p146, %p147
      %p149 = scmp.ne.s32.totalorder %s137, %s138
      %p150 = scmp.eq.s32.totalorder %s23, 1
      %p151 = por %p149, %p150
      %p153 = scmp.ne.s32.totalorder %s138, %s152
      %p154 = scmp.eq.s32.totalorder %s23, 0
      %p155 = por %p153, %p154
      %s157 = sadd.s32 %s156, 1
      %p160 = scmp.eq.s32.totalorder %s17, 1
      %p161 = scmp.ne.s32.totalorder %s156, %s158
      %p162 = scmp.eq.s32.totalorder %s17, 0
      %p163 = por %p161, %p162
      %p164 = scmp.ne.s32.totalorder %s156, %s158
      %p165 = scmp.eq.s32.totalorder %s22, 1
      %p166 = por %p164, %p165
      %p167 = scmp.ne.s32.totalorder %s158, %s159
      %p168 = scmp.eq.s32.totalorder %s22, 0
      %p169 = por %p167, %p168
      %p170 = scmp.ne.s32.totalorder %s158, %s159
      %p171 = scmp.eq.s32.totalorder %s23, 1
      %p172 = por %p170, %p171
      %p174 = scmp.ne.s32.totalorder %s159, %s173
      %p175 = scmp.eq.s32.totalorder %s23, 0
      %p176 = por %p174, %p175
      %s177 = ssub.s32 %s17, %s24
      %p178 = scmp.eq.s32.totalorder %s177, 0
      %s180 = sadd.s32 %s179, 1
      %s181 = scalar_select %p178, %s179, %s180
      %p184 = pneg %p178
      %p185 = scmp.eq.s32.totalorder %s17, 1
      %p186 = por %p184, %p185
      %p187 = scmp.ne.s32.totalorder %s179, %s182
      %p188 = scmp.eq.s32.totalorder %s17, 0
      %p189 = por %p187, %p188
      %p190 = scmp.ne.s32.totalorder %s179, %s182
      %p191 = scmp.eq.s32.totalorder %s22, 1
      %p192 = por %p190, %p191
      %p193 = scmp.ne.s32.totalorder %s182, %s183
      %p194 = scmp.eq.s32.totalorder %s22, 0
      %p195 = por %p193, %p194
      %p196 = scmp.ne.s32.totalorder %s182, %s183
      %p197 = scmp.eq.s32.totalorder %s23, 1
      %p198 = por %p196, %p197
      %p200 = scmp.ne.s32.totalorder %s183, %s199
      %p201 = scmp.eq.s32.totalorder %s23, 0
      %p202 = por %p200, %p201
      %p203 = scmp.le.s32.totalorder 1, %s17
      %p204 = scmp.lt.s32.totalorder %s17, 3
      %p205 = pnand %p203, %p204
      %p206 = pneg %p205
      // Predicated region
      $region9: #{uncertainty_mlp.1} parent=5 // pred_check
        _
      $region10: #{uncertainty_mlp.1} parent=5 // pred_check_branch
        %208 = sbr.rel (%p205) target = $region12
      $region11: #{uncertainty_mlp.1} parent=5 // pred_region
        %s209 = ssub.s32 %s17, 1
        // Predicated region
        $region13: #{uncertainty_mlp.1} parent=11 // pred_check
          %p210 = pneg %p64
        $region14: #{uncertainty_mlp.1} parent=11 // pred_check_branch
          %212 = sbr.rel (%p210) target = $region16
        $region15: #{uncertainty_mlp.1} parent=11 // pred_region
          _
        $region16: #{uncertainty_mlp.1} parent=11 // pred_fallthru
          _
        // Predicated region
        $region17: #{uncertainty_mlp.1} parent=11 // pred_check
          %p213 = pneg %p85
        $region18: #{uncertainty_mlp.1} parent=11 // pred_check_branch
          %215 = sbr.rel (%p213) target = $region20
        $region19: #{uncertainty_mlp.1} parent=11 // pred_region
          _
        $region20: #{uncertainty_mlp.1} parent=11 // pred_fallthru
          _
        // Predicated region
        $region21: #{uncertainty_mlp.1} parent=11 // pred_check
          %p216 = pneg %p106
        $region22: #{uncertainty_mlp.1} parent=11 // pred_check_branch
          %218 = sbr.rel (%p216) target = $region24
        $region23: #{uncertainty_mlp.1} parent=11 // pred_region
          _
        $region24: #{uncertainty_mlp.1} parent=11 // pred_fallthru
          _
        // Predicated region
        $region25: #{uncertainty_mlp.1} parent=11 // pred_check
          %p219 = pneg %p127
        $region26: #{uncertainty_mlp.1} parent=11 // pred_check_branch
          %221 = sbr.rel (%p219) target = $region28
        $region27: #{uncertainty_mlp.1} parent=11 // pred_region
          _
        $region28: #{uncertainty_mlp.1} parent=11 // pred_fallthru
          _
        // Predicated region
        $region29: #{uncertainty_mlp.1} parent=11 // pred_check
          %p222 = pneg %p148
        $region30: #{uncertainty_mlp.1} parent=11 // pred_check_branch
          %224 = sbr.rel (%p222) target = $region32
        $region31: #{uncertainty_mlp.1} parent=11 // pred_region
          _
        $region32: #{uncertainty_mlp.1} parent=11 // pred_fallthru
          _
        // Predicated region
        $region33: #{uncertainty_mlp.1} parent=11 // pred_check
          %p225 = pneg %p169
        $region34: #{uncertainty_mlp.1} parent=11 // pred_check_branch
          %227 = sbr.rel (%p225) target = $region36
        $region35: #{uncertainty_mlp.1} parent=11 // pred_region
          _
        $region36: #{uncertainty_mlp.1} parent=11 // pred_fallthru
          _
      $region12: #{uncertainty_mlp.1} parent=5 // pred_fallthru
        _
      %p228 = scmp.lt.s32.totalorder %s17, 2
      // Predicated region
      $region37: #{uncertainty_mlp.1} parent=5 // pred_check
        %p229 = pneg %p228
      $region38: #{uncertainty_mlp.1} parent=5 // pred_check_branch
        %231 = sbr.rel (%p229) target = $region40
      $region39: #{uncertainty_mlp.1} parent=5 // pred_region
        // Predicated region
        $region41: #{uncertainty_mlp.1} parent=39 // pred_check
          %p232 = pneg %p37
        $region42: #{uncertainty_mlp.1} parent=39 // pred_check_branch
          %234 = sbr.rel (%p232) target = $region44
        $region43: #{uncertainty_mlp.1} parent=39 // pred_region
          %s235 = smul.u32 16, %s17
          %s236 = ssub.s32 25, %s235
          %p237 = scmp.lt.s32.totalorder %s236, 16
          %s238 = scalar_select %p237, %s236, 16
          %s239 = smul.u32 128, %s238
          %p240 = scmp.lt.s32.totalorder %s235, 24
          %s241 = scalar_select %p240, %s235, 24
          %s242 = smul.addr %s241, 8
          %s243 = scalar_lea.vmem %s0, %s242
          %s244 = smul.u32 16, %s17
          %s245 = ssub.s32 25, %s244
          %p246 = scmp.lt.s32.totalorder %s245, 16
          %s247 = scalar_select %p246, %s245, 16
          %s248 = smul.u32 128, %s247
        $region44: #{uncertainty_mlp.1} parent=39 // pred_fallthru
          _
      $region40: #{uncertainty_mlp.1} parent=5 // pred_fallthru
        _
      %p249 = scmp.le.s32.totalorder 1, %s17
      %p250 = scmp.lt.s32.totalorder %s17, 3
      %p251 = pnand %p249, %p250
      %p252 = pneg %p251
      // Predicated region
      $region45: #{uncertainty_mlp.1} parent=5 // pred_check
        _
      $region46: #{uncertainty_mlp.1} parent=5 // pred_check_branch
        %254 = sbr.rel (%p251) target = $region48
      $region47: #{uncertainty_mlp.1} parent=5 // pred_region
        %s255 = ssub.s32 %s17, 1
        %s256 = smul.u32 16, %s22
        %s257 = ssub.s32 25, %s256
        %p258 = scmp.lt.s32.totalorder %s257, 16
        %s259 = scalar_select %p258, %s257, 16
        %s260 = smul.u32 128, %s259
        %p261 = scmp.lt.s32.totalorder %s256, 24
        %s262 = scalar_select %p261, %s256, 24
        %s263 = smul.addr %s262, 8
        %s264 = scalar_lea.vmem %s0, %s263
        %p265 = pneg %p43
        %p266 = pneg %p40
        %p267 = pneg %p64
        %p268 = pneg %p61
        %p269 = pneg %p85
        %p270 = pneg %p82
        %p271 = pneg %p106
        %p272 = pneg %p103
        %p273 = pneg %p127
        %p274 = pneg %p124
        %p275 = pneg %p148
        %p276 = pneg %p145
        %p277 = pneg %p169
        %p278 = pneg %p166
        %p279 = pneg %p195
        %p280 = pneg %p192
        %s281 = sand.u32 %s182, 1
        %s282 = scalar_lea.sflag [#allocation4], %s281
        %s283 = sand.u32 %s182, 1
        %s284 = scalar_lea.vmem [#allocation3], %s283
        %s285 = smul.u32 16, %s22
        %s286 = ssub.s32 25, %s285
        %p287 = scmp.lt.s32.totalorder %s286, 16
        %s288 = scalar_select %p287, %s286, 16
        %s289 = smul.u32 128, %s288
        %p290 = scmp.lt.s32.totalorder %s285, 24
        %s291 = scalar_select %p290, %s285, 24
        %s292 = smul.addr %s291, 8
        %s293 = scalar_lea.vmem %s0, %s292
        %s294 = smul.u32 16, %s22
        %s295 = ssub.s32 25, %s294
        %p296 = scmp.lt.s32.totalorder %s295, 16
        %s297 = scalar_select %p296, %s295, 16
        %s298 = smul.u32 128, %s297
        %v300 = vld [vmem:[%s293] sm:$0xff]
        %v301 = vld [vmem:[%s293 + $0x8] sm:$0xff]
        %v302 = vld [vmem:[%s293 + $0x10] sm:$0xff]
        %v303 = vld [vmem:[%s293 + $0x18] sm:$0xff]
        %v304 = vld [vmem:[%s293 + $0x20] sm:$0xff]
        %v305 = vld [vmem:[%s293 + $0x28] sm:$0xff]
        %v306 = vld [vmem:[%s293 + $0x30] sm:$0xff]
        %v307 = vld [vmem:[%s293 + $0x38] sm:$0xff]
        %v308 = vld [vmem:[%s293 + $0x40] sm:$0xff]
        %v309 = vld [vmem:[%s293 + $0x48] sm:$0xff]
        %v310 = vld [vmem:[%s293 + $0x50] sm:$0xff]
        %v311 = vld [vmem:[%s293 + $0x58] sm:$0xff]
        %v312 = vld [vmem:[%s293 + $0x60] sm:$0xff]
        %v313 = vld [vmem:[%s293 + $0x68] sm:$0xff]
        %v314 = vld [vmem:[%s293 + $0x70] sm:$0xff]
        %v315 = vld [vmem:[%s293 + $0x78] sm:$0xff]
        %v316 = vpack.c.bf16 %v301, %v300
        %v317 = vpack.c.bf16 %v303, %v302
        %v318 = vpack.c.bf16 %v305, %v304
        %v319 = vpack.c.bf16 %v307, %v306
        %v320 = vpack.c.bf16 %v309, %v308
        %v321 = vpack.c.bf16 %v311, %v310
        %v322 = vpack.c.bf16 %v313, %v312
        %v323 = vpack.c.bf16 %v315, %v314
        %v324 = vld [vmem:[%s1] sm:$0xf]
        %v325 = vld [vmem:[%s1 + $0x4] sm:$0xf]
        %v326 = vld [vmem:[%s1 + $0x8] sm:$0xf]
        %v327 = vld [vmem:[%s1 + $0xc] sm:$0xf]
        %v328 = vld [vmem:[%s2] sm:$0x1]
        %v330 = vlaneseq
        %v331 = vshrl.u32 %v330, 7
        %v332 = vsub.s32 0, %v331
        %v333 = vrot.slane %v328, %v332
        %v339 = vunpack.c.l.b16 %v324
        %v340 = vunpack.c.l.b16 %v325
        %v341 = vunpack.c.l.b16 %v326
        %v342 = vunpack.c.l.b16 %v327
        %v343 = vpack.c.b16 %v340, %v339
        %v344 = vpack.c.b16 %v342, %v341
        %vm347 = vcmask 261120
        %v349 = vsel %vm347, %v316, 0
        %v352 = vsel %vm347, %v317, 0
        %v355 = vsel %vm347, %v318, 0
        %v358 = vsel %vm347, %v319, 0
        %v361 = vsel %vm347, %v320, 0
        %v364 = vsel %vm347, %v321, 0
        %v367 = vsel %vm347, %v322, 0
        %v370 = vsel %vm347, %v323, 0
        %372 = vmatprep.subr.bf16.mxu0 0
        %373 = vmatpush1.bf16.msra.mxu0 %v343
        %374 = vmatprep.subr.bf16.mxu0 0
        %375 = vmatpush1.bf16.msra.mxu0 %v344
        %376 = vmatprep.subr.bf16.mxu0 0
        %377 = vmatpush1.bf16.msra.mxu0 0
        %378 = vmatprep.subr.bf16.mxu0 0
        %379 = vmatpush1.bf16.msra.mxu0 0
        %380 = vmatprep.subr.bf16.mxu0 0
        %381 = vmatpush1.bf16.msra.mxu0 0
        %382 = vmatprep.subr.bf16.mxu0 0
        %383 = vmatpush1.bf16.msra.mxu0 0
        %384 = vmatprep.subr.bf16.mxu0 0
        %385 = vmatpush1.bf16.msra.mxu0 0
        %386 = vmatprep.subr.bf16.mxu0 0
        %387 = vmatpush1.bf16.msra.mxu0 0
        %388 = vmatprep.subr.bf16.mxu0 0
        %389 = vmatpush1.bf16.msra.mxu0 0
        %390 = vmatprep.subr.bf16.mxu0 0
        %391 = vmatpush1.bf16.msra.mxu0 0
        %392 = vmatprep.subr.bf16.mxu0 0
        %393 = vmatpush1.bf16.msra.mxu0 0
        %394 = vmatprep.subr.bf16.mxu0 0
        %395 = vmatpush1.bf16.msra.mxu0 0
        %396 = vmatprep.subr.bf16.mxu0 0
        %397 = vmatpush1.bf16.msra.mxu0 0
        %398 = vmatprep.subr.bf16.mxu0 0
        %399 = vmatpush1.bf16.msra.mxu0 0
        %400 = vmatprep.subr.bf16.mxu0 0
        %401 = vmatpush1.bf16.msra.mxu0 0
        %402 = vmatprep.subr.bf16.mxu0 0
        %403 = vmatpush1.bf16.msra.mxu0 0
        %404 = vmatprep.mubr.bf16.mxu0 0
        %405 = vmatmul.mubr.bf16.gmra.mrb[0].mxu0 %v349
        %v406 = vpop.f32.mrb[0].mxu0
        %v407 = vadd.f32 %v333, %v406
        %v408 = vpop.f32.mrb[0].mxu0
        %v409 = vpop.f32.mrb[0].mxu0
        %v410 = vadd.f32 %v333, %v409
        %v411 = vpop.f32.mrb[0].mxu0
        %412 = vmatprep.mubr.bf16.mxu0 0
        %413 = vmatmul.mubr.bf16.gmra.mrb[0].mxu0 %v352
        %v414 = vpop.f32.mrb[0].mxu0
        %v415 = vadd.f32 %v333, %v414
        %v416 = vpop.f32.mrb[0].mxu0
        %v417 = vpop.f32.mrb[0].mxu0
        %v418 = vadd.f32 %v333, %v417
        %v419 = vpop.f32.mrb[0].mxu0
        %420 = vmatprep.mubr.bf16.mxu0 0
        %421 = vmatmul.mubr.bf16.gmra.mrb[0].mxu0 %v355
        %v422 = vpop.f32.mrb[0].mxu0
        %v423 = vadd.f32 %v333, %v422
        %v424 = vpop.f32.mrb[0].mxu0
        %v425 = vpop.f32.mrb[0].mxu0
        %v426 = vadd.f32 %v333, %v425
        %v427 = vpop.f32.mrb[0].mxu0
        %428 = vmatprep.mubr.bf16.mxu0 0
        %429 = vmatmul.mubr.bf16.gmra.mrb[0].mxu0 %v358
        %v430 = vpop.f32.mrb[0].mxu0
        %v431 = vadd.f32 %v333, %v430
        %v432 = vpop.f32.mrb[0].mxu0
        %v433 = vpop.f32.mrb[0].mxu0
        %v434 = vadd.f32 %v333, %v433
        %v435 = vpop.f32.mrb[0].mxu0
        %436 = vmatprep.mubr.bf16.mxu0 0
        %437 = vmatmul.mubr.bf16.gmra.mrb[0].mxu0 %v361
        %v438 = vpop.f32.mrb[0].mxu0
        %v439 = vadd.f32 %v333, %v438
        %v440 = vpop.f32.mrb[0].mxu0
        %v441 = vpop.f32.mrb[0].mxu0
        %v442 = vadd.f32 %v333, %v441
        %v443 = vpop.f32.mrb[0].mxu0
        %444 = vmatprep.mubr.bf16.mxu0 0
        %445 = vmatmul.mubr.bf16.gmra.mrb[0].mxu0 %v364
        %v446 = vpop.f32.mrb[0].mxu0
        %v447 = vadd.f32 %v333, %v446
        %v448 = vpop.f32.mrb[0].mxu0
        %v449 = vpop.f32.mrb[0].mxu0
        %v450 = vadd.f32 %v333, %v449
        %v451 = vpop.f32.mrb[0].mxu0
        %452 = vmatprep.mubr.bf16.mxu0 0
        %453 = vmatmul.mubr.bf16.gmra.mrb[0].mxu0 %v367
        %v454 = vpop.f32.mrb[0].mxu0
        %v455 = vadd.f32 %v333, %v454
        %v456 = vpop.f32.mrb[0].mxu0
        %v457 = vpop.f32.mrb[0].mxu0
        %v458 = vadd.f32 %v333, %v457
        %v459 = vpop.f32.mrb[0].mxu0
        %460 = vmatprep.mubr.bf16.mxu0 0
        %461 = vmatmul.mubr.bf16.gmra.mrb[0].mxu0 %v370
        %v462 = vpop.f32.mrb[0].mxu0
        %v463 = vadd.f32 %v333, %v462
        %v464 = vpop.f32.mrb[0].mxu0
        %v465 = vpop.f32.mrb[0].mxu0
        %v466 = vadd.f32 %v333, %v465
        %v467 = vpop.f32.mrb[0].mxu0
        %468 = vdwg.mxu0
        %v469 = vmax.f32 %v407, 0.0
        %v470 = vmax.f32 %v410, 0.0
        %v471 = vmax.f32 %v415, 0.0
        %v472 = vmax.f32 %v418, 0.0
        %v473 = vmax.f32 %v423, 0.0
        %v474 = vmax.f32 %v426, 0.0
        %v475 = vmax.f32 %v431, 0.0
        %v476 = vmax.f32 %v434, 0.0
        %v477 = vmax.f32 %v439, 0.0
        %v478 = vmax.f32 %v442, 0.0
        %v479 = vmax.f32 %v447, 0.0
        %v480 = vmax.f32 %v450, 0.0
        %v481 = vmax.f32 %v455, 0.0
        %v482 = vmax.f32 %v458, 0.0
        %v483 = vmax.f32 %v463, 0.0
        %v484 = vmax.f32 %v466, 0.0
        %v485 = vpack.c.bf16 %v470, %v469
        %v486 = vpack.c.bf16 %v472, %v471
        %v487 = vpack.c.bf16 %v474, %v473
        %v488 = vpack.c.bf16 %v476, %v475
        %v489 = vpack.c.bf16 %v478, %v477
        %v490 = vpack.c.bf16 %v480, %v479
        %v491 = vpack.c.bf16 %v482, %v481
        %v492 = vpack.c.bf16 %v484, %v483
        %v493 = vld [vmem:[%s3] sm:$0xf]
        %v494 = vld [vmem:[%s3 + $0x4] sm:$0xf]
        %v495 = vld [vmem:[%s3 + $0x8] sm:$0xf]
        %v496 = vld [vmem:[%s3 + $0xc] sm:$0xf]
        %v497 = vld [vmem:[%s3 + $0x10] sm:$0xf]
        %v498 = vld [vmem:[%s3 + $0x14] sm:$0xf]
        %v499 = vld [vmem:[%s3 + $0x18] sm:$0xf]
        %v500 = vld [vmem:[%s3 + $0x1c] sm:$0xf]
        %v501 = vld [vmem:[%s4] sm:$0x1]
        %v503 = vlaneseq
        %v504 = vshrl.u32 %v503, 7
        %v505 = vsub.s32 0, %v504
        %v506 = vrot.slane %v501, %v505
        %v516 = vunpack.c.l.b16 %v493
        %v517 = vunpack.c.l.b16 %v494
        %v518 = vunpack.c.l.b16 %v495
        %v519 = vunpack.c.l.b16 %v496
        %v520 = vunpack.c.l.b16 %v497
        %v521 = vunpack.c.l.b16 %v498
        %v522 = vunpack.c.l.b16 %v499
        %v523 = vunpack.c.l.b16 %v500
        %v524 = vpack.c.b16 %v517, %v516
        %v525 = vpack.c.b16 %v519, %v518
        %v526 = vpack.c.b16 %v521, %v520
        %v527 = vpack.c.b16 %v523, %v522
        %vm532 = vcmask 523264
        %v534 = vsel %vm532, %v485, 0
        %v537 = vsel %vm532, %v486, 0
        %v540 = vsel %vm532, %v487, 0
        %v543 = vsel %vm532, %v488, 0
        %v546 = vsel %vm532, %v489, 0
        %v549 = vsel %vm532, %v490, 0
        %v552 = vsel %vm532, %v491, 0
        %v555 = vsel %vm532, %v492, 0
        %557 = vmatprep.subr.bf16.mxu0 0
        %558 = vmatpush1.bf16.msra.mxu0 %v524
        %559 = vmatprep.subr.bf16.mxu0 0
        %560 = vmatpush1.bf16.msra.mxu0 %v525
        %561 = vmatprep.subr.bf16.mxu0 0
        %562 = vmatpush1.bf16.msra.mxu0 %v526
        %563 = vmatprep.subr.bf16.mxu0 0
        %564 = vmatpush1.bf16.msra.mxu0 %v527
        %565 = vmatprep.subr.bf16.mxu0 0
        %566 = vmatpush1.bf16.msra.mxu0 0
        %567 = vmatprep.subr.bf16.mxu0 0
        %568 = vmatpush1.bf16.msra.mxu0 0
        %569 = vmatprep.subr.bf16.mxu0 0
        %570 = vmatpush1.bf16.msra.mxu0 0
        %571 = vmatprep.subr.bf16.mxu0 0
        %572 = vmatpush1.bf16.msra.mxu0 0
        %573 = vmatprep.subr.bf16.mxu0 0
        %574 = vmatpush1.bf16.msra.mxu0 0
        %575 = vmatprep.subr.bf16.mxu0 0
        %576 = vmatpush1.bf16.msra.mxu0 0
        %577 = vmatprep.subr.bf16.mxu0 0
        %578 = vmatpush1.bf16.msra.mxu0 0
        %579 = vmatprep.subr.bf16.mxu0 0
        %580 = vmatpush1.bf16.msra.mxu0 0
        %581 = vmatprep.subr.bf16.mxu0 0
        %582 = vmatpush1.bf16.msra.mxu0 0
        %583 = vmatprep.subr.bf16.mxu0 0
        %584 = vmatpush1.bf16.msra.mxu0 0
        %585 = vmatprep.subr.bf16.mxu0 0
        %586 = vmatpush1.bf16.msra.mxu0 0
        %587 = vmatprep.subr.bf16.mxu0 0
        %588 = vmatpush1.bf16.msra.mxu0 0
        %589 = vmatprep.mubr.bf16.mxu0 0
        %590 = vmatmul.mubr.bf16.gmra.mrb[0].mxu0 %v534
        %v591 = vpop.f32.mrb[0].mxu0
        %v592 = vadd.f32 %v506, %v591
        %v593 = vpop.f32.mrb[0].mxu0
        %v594 = vpop.f32.mrb[0].mxu0
        %v595 = vadd.f32 %v506, %v594
        %v596 = vpop.f32.mrb[0].mxu0
        %597 = vmatprep.mubr.bf16.mxu0 0
        %598 = vmatmul.mubr.bf16.gmra.mrb[0].mxu0 %v537
        %v599 = vpop.f32.mrb[0].mxu0
        %v600 = vadd.f32 %v506, %v599
        %v601 = vpop.f32.mrb[0].mxu0
        %v602 = vpop.f32.mrb[0].mxu0
        %v603 = vadd.f32 %v506, %v602
        %v604 = vpop.f32.mrb[0].mxu0
        %605 = vmatprep.mubr.bf16.mxu0 0
        %606 = vmatmul.mubr.bf16.gmra.mrb[0].mxu0 %v540
        %v607 = vpop.f32.mrb[0].mxu0
        %v608 = vadd.f32 %v506, %v607
        %v609 = vpop.f32.mrb[0].mxu0
        %v610 = vpop.f32.mrb[0].mxu0
        %v611 = vadd.f32 %v506, %v610
        %v612 = vpop.f32.mrb[0].mxu0
        %613 = vmatprep.mubr.bf16.mxu0 0
        %614 = vmatmul.mubr.bf16.gmra.mrb[0].mxu0 %v543
        %v615 = vpop.f32.mrb[0].mxu0
        %v616 = vadd.f32 %v506, %v615
        %v617 = vpop.f32.mrb[0].mxu0
        %v618 = vpop.f32.mrb[0].mxu0
        %v619 = vadd.f32 %v506, %v618
        %v620 = vpop.f32.mrb[0].mxu0
        %621 = vmatprep.mubr.bf16.mxu0 0
        %622 = vmatmul.mubr.bf16.gmra.mrb[0].mxu0 %v546
        %v623 = vpop.f32.mrb[0].mxu0
        %v624 = vadd.f32 %v506, %v623
        %v625 = vpop.f32.mrb[0].mxu0
        %v626 = vpop.f32.mrb[0].mxu0
        %v627 = vadd.f32 %v506, %v626
        %v628 = vpop.f32.mrb[0].mxu0
        %629 = vmatprep.mubr.bf16.mxu0 0
        %630 = vmatmul.mubr.bf16.gmra.mrb[0].mxu0 %v549
        %v631 = vpop.f32.mrb[0].mxu0
        %v632 = vadd.f32 %v506, %v631
        %v633 = vpop.f32.mrb[0].mxu0
        %v634 = vpop.f32.mrb[0].mxu0
        %v635 = vadd.f32 %v506, %v634
        %v636 = vpop.f32.mrb[0].mxu0
        %637 = vmatprep.mubr.bf16.mxu0 0
        %638 = vmatmul.mubr.bf16.gmra.mrb[0].mxu0 %v552
        %v639 = vpop.f32.mrb[0].mxu0
        %v640 = vadd.f32 %v506, %v639
        %v641 = vpop.f32.mrb[0].mxu0
        %v642 = vpop.f32.mrb[0].mxu0
        %v643 = vadd.f32 %v506, %v642
        %v644 = vpop.f32.mrb[0].mxu0
        %645 = vmatprep.mubr.bf16.mxu0 0
        %646 = vmatmul.mubr.bf16.gmra.mrb[0].mxu0 %v555
        %v647 = vpop.f32.mrb[0].mxu0
        %v648 = vadd.f32 %v506, %v647
        %v649 = vpop.f32.mrb[0].mxu0
        %v650 = vpop.f32.mrb[0].mxu0
        %v651 = vadd.f32 %v506, %v650
        %v652 = vpop.f32.mrb[0].mxu0
        %653 = vdwg.mxu0
        %v654 = vmax.f32 %v592, 0.0
        %v655 = vmax.f32 %v595, 0.0
        %v656 = vmax.f32 %v600, 0.0
        %v657 = vmax.f32 %v603, 0.0
        %v658 = vmax.f32 %v608, 0.0
        %v659 = vmax.f32 %v611, 0.0
        %v660 = vmax.f32 %v616, 0.0
        %v661 = vmax.f32 %v619, 0.0
        %v662 = vmax.f32 %v624, 0.0
        %v663 = vmax.f32 %v627, 0.0
        %v664 = vmax.f32 %v632, 0.0
        %v665 = vmax.f32 %v635, 0.0
        %v666 = vmax.f32 %v640, 0.0
        %v667 = vmax.f32 %v643, 0.0
        %v668 = vmax.f32 %v648, 0.0
        %v669 = vmax.f32 %v651, 0.0
        %v670 = vld [vmem:[%s5] sm:$0x1]
        %v672 = vlaneseq
        %v673 = vshrl.u32 %v672, 7
        %v674 = vsub.s32 0, %v673
        %v675 = vrot.slane %v670, %v674
        %v677 = vmul.f32 %v654, %v675
        %v678 = vmul.f32 %v655, %v675
        %v679 = vmul.f32 %v656, %v675
        %v680 = vmul.f32 %v657, %v675
        %v681 = vmul.f32 %v658, %v675
        %v682 = vmul.f32 %v659, %v675
        %v683 = vmul.f32 %v660, %v675
        %v684 = vmul.f32 %v661, %v675
        %v685 = vmul.f32 %v662, %v675
        %v686 = vmul.f32 %v663, %v675
        %v687 = vmul.f32 %v664, %v675
        %v688 = vmul.f32 %v665, %v675
        %v689 = vmul.f32 %v666, %v675
        %v690 = vmul.f32 %v667, %v675
        %v691 = vmul.f32 %v668, %v675
        %v692 = vmul.f32 %v669, %v675
        %v693 = vsel %vm532, %v677, 0.0
        %694 = vadd.xlane.f32.xlu0 %v693
        %v695 = vpop.xlane.xlu0 %694
        %v696 = vsel %vm532, %v678, 0.0
        %697 = vadd.xlane.f32.xlu0 %v696
        %v698 = vpop.xlane.xlu0 %697
        %v699 = vsel %vm532, %v679, 0.0
        %700 = vadd.xlane.f32.xlu0 %v699
        %v701 = vpop.xlane.xlu0 %700
        %v702 = vsel %vm532, %v680, 0.0
        %703 = vadd.xlane.f32.xlu0 %v702
        %v704 = vpop.xlane.xlu0 %703
        %v705 = vsel %vm532, %v681, 0.0
        %706 = vadd.xlane.f32.xlu0 %v705
        %v707 = vpop.xlane.xlu0 %706
        %v708 = vsel %vm532, %v682, 0.0
        %709 = vadd.xlane.f32.xlu0 %v708
        %v710 = vpop.xlane.xlu0 %709
        %v711 = vsel %vm532, %v683, 0.0
        %712 = vadd.xlane.f32.xlu0 %v711
        %v713 = vpop.xlane.xlu0 %712
        %v714 = vsel %vm532, %v684, 0.0
        %715 = vadd.xlane.f32.xlu0 %v714
        %v716 = vpop.xlane.xlu0 %715
        %v717 = vsel %vm532, %v685, 0.0
        %718 = vadd.xlane.f32.xlu0 %v717
        %v719 = vpop.xlane.xlu0 %718
        %v720 = vsel %vm532, %v686, 0.0
        %721 = vadd.xlane.f32.xlu0 %v720
        %v722 = vpop.xlane.xlu0 %721
        %v723 = vsel %vm532, %v687, 0.0
        %724 = vadd.xlane.f32.xlu0 %v723
        %v725 = vpop.xlane.xlu0 %724
        %v726 = vsel %vm532, %v688, 0.0
        %727 = vadd.xlane.f32.xlu0 %v726
        %v728 = vpop.xlane.xlu0 %727
        %v729 = vsel %vm532, %v689, 0.0
        %730 = vadd.xlane.f32.xlu0 %v729
        %v731 = vpop.xlane.xlu0 %730
        %v732 = vsel %vm532, %v690, 0.0
        %733 = vadd.xlane.f32.xlu0 %v732
        %v734 = vpop.xlane.xlu0 %733
        %v735 = vsel %vm532, %v691, 0.0
        %736 = vadd.xlane.f32.xlu0 %v735
        %v737 = vpop.xlane.xlu0 %736
        %v738 = vsel %vm532, %v692, 0.0
        %739 = vadd.xlane.f32.xlu0 %v738
        %v740 = vpop.xlane.xlu0 %739
        %s741 = sld [smem:[#allocation2]]
        %v742 = vstv %s741
        %v743 = vadd.f32 %v695, %v742
        %v744 = vadd.f32 %v698, %v742
        %v745 = vadd.f32 %v701, %v742
        %v746 = vadd.f32 %v704, %v742
        %v747 = vadd.f32 %v707, %v742
        %v748 = vadd.f32 %v710, %v742
        %v749 = vadd.f32 %v713, %v742
        %v750 = vadd.f32 %v716, %v742
        %v751 = vadd.f32 %v719, %v742
        %v752 = vadd.f32 %v722, %v742
        %v753 = vadd.f32 %v725, %v742
        %v754 = vadd.f32 %v728, %v742
        %v755 = vadd.f32 %v731, %v742
        %v756 = vadd.f32 %v734, %v742
        %v757 = vadd.f32 %v737, %v742
        %v758 = vadd.f32 %v740, %v742
        %v759 = vmax.f32 %v743, 0.0
        %v760 = vmax.f32 %v744, 0.0
        %v761 = vmax.f32 %v745, 0.0
        %v762 = vmax.f32 %v746, 0.0
        %v763 = vmax.f32 %v747, 0.0
        %v764 = vmax.f32 %v748, 0.0
        %v765 = vmax.f32 %v749, 0.0
        %v766 = vmax.f32 %v750, 0.0
        %v767 = vmax.f32 %v751, 0.0
        %v768 = vmax.f32 %v752, 0.0
        %v769 = vmax.f32 %v753, 0.0
        %v770 = vmax.f32 %v754, 0.0
        %v771 = vmax.f32 %v755, 0.0
        %v772 = vmax.f32 %v756, 0.0
        %v773 = vmax.f32 %v757, 0.0
        %v774 = vmax.f32 %v758, 0.0
        %v775 = vand.u32 2147483647, %v743
        %v776 = vand.u32 2147483647, %v744
        %v777 = vand.u32 2147483647, %v745
        %v778 = vand.u32 2147483647, %v746
        %v779 = vand.u32 2147483647, %v747
        %v780 = vand.u32 2147483647, %v748
        %v781 = vand.u32 2147483647, %v749
        %v782 = vand.u32 2147483647, %v750
        %v783 = vand.u32 2147483647, %v751
        %v784 = vand.u32 2147483647, %v752
        %v785 = vand.u32 2147483647, %v753
        %v786 = vand.u32 2147483647, %v754
        %v787 = vand.u32 2147483647, %v755
        %v788 = vand.u32 2147483647, %v756
        %v789 = vand.u32 2147483647, %v757
        %v790 = vand.u32 2147483647, %v758
        %v791 = vsub.f32 0.0, %v775
        %v792 = vsub.f32 0.0, %v776
        %v793 = vsub.f32 0.0, %v777
        %v794 = vsub.f32 0.0, %v778
        %v795 = vsub.f32 0.0, %v779
        %v796 = vsub.f32 0.0, %v780
        %v797 = vsub.f32 0.0, %v781
        %v798 = vsub.f32 0.0, %v782
        %v799 = vsub.f32 0.0, %v783
        %v800 = vsub.f32 0.0, %v784
        %v801 = vsub.f32 0.0, %v785
        %v802 = vsub.f32 0.0, %v786
        %v803 = vsub.f32 0.0, %v787
        %v804 = vsub.f32 0.0, %v788
        %v805 = vsub.f32 0.0, %v789
        %v806 = vsub.f32 0.0, %v790
        %v807 = vmul.f32 %v791, 1.442695
        %v808 = vpow.pop %v807
        %v809 = vmul.f32 %v792, 1.442695
        %v810 = vpow.pop %v809
        %v811 = vmul.f32 %v793, 1.442695
        %v812 = vpow.pop %v811
        %v813 = vmul.f32 %v794, 1.442695
        %v814 = vpow.pop %v813
        %v815 = vmul.f32 %v795, 1.442695
        %v816 = vpow.pop %v815
        %v817 = vmul.f32 %v796, 1.442695
        %v818 = vpow.pop %v817
        %v819 = vmul.f32 %v797, 1.442695
        %v820 = vpow.pop %v819
        %v821 = vmul.f32 %v798, 1.442695
        %v822 = vpow.pop %v821
        %v823 = vmul.f32 %v799, 1.442695
        %v824 = vpow.pop %v823
        %v825 = vmul.f32 %v800, 1.442695
        %v826 = vpow.pop %v825
        %v827 = vmul.f32 %v801, 1.442695
        %v828 = vpow.pop %v827
        %v829 = vmul.f32 %v802, 1.442695
        %v830 = vpow.pop %v829
        %v831 = vmul.f32 %v803, 1.442695
        %v832 = vpow.pop %v831
        %v833 = vmul.f32 %v804, 1.442695
        %v834 = vpow.pop %v833
        %v835 = vmul.f32 %v805, 1.442695
        %v836 = vpow.pop %v835
        %v837 = vmul.f32 %v806, 1.442695
        %v838 = vpow.pop %v837
        %v839 = vadd.f32 %v808, 1.0
        %v840 = vlog2.pop %v839
        %v841 = vmul.f32 %v840, 0.6931472
        %v842 = vmul.f32 -0.5, %v808
        %v843 = vadd.f32 %v842, 1.0
        %v844 = vmul.f32 %v843, %v808
        %v845 = vand.u32 2147483647, %v808
        %vm846 = vcmp.lt.f32.partialorder %v845, 0.0004427343
        %v847 = vsel %vm846, %v844, %v841
        %v848 = vadd.f32 %v810, 1.0
        %v849 = vlog2.pop %v848
        %v850 = vmul.f32 %v849, 0.6931472
        %v851 = vmul.f32 -0.5, %v810
        %v852 = vadd.f32 %v851, 1.0
        %v853 = vmul.f32 %v852, %v810
        %v854 = vand.u32 2147483647, %v810
        %vm855 = vcmp.lt.f32.partialorder %v854, 0.0004427343
        %v856 = vsel %vm855, %v853, %v850
        %v857 = vadd.f32 %v812, 1.0
        %v858 = vlog2.pop %v857
        %v859 = vmul.f32 %v858, 0.6931472
        %v860 = vmul.f32 -0.5, %v812
        %v861 = vadd.f32 %v860, 1.0
        %v862 = vmul.f32 %v861, %v812
        %v863 = vand.u32 2147483647, %v812
        %vm864 = vcmp.lt.f32.partialorder %v863, 0.0004427343
        %v865 = vsel %vm864, %v862, %v859
        %v866 = vadd.f32 %v814, 1.0
        %v867 = vlog2.pop %v866
        %v868 = vmul.f32 %v867, 0.6931472
        %v869 = vmul.f32 -0.5, %v814
        %v870 = vadd.f32 %v869, 1.0
        %v871 = vmul.f32 %v870, %v814
        %v872 = vand.u32 2147483647, %v814
        %vm873 = vcmp.lt.f32.partialorder %v872, 0.0004427343
        %v874 = vsel %vm873, %v871, %v868
        %v875 = vadd.f32 %v816, 1.0
        %v876 = vlog2.pop %v875
        %v877 = vmul.f32 %v876, 0.6931472
        %v878 = vmul.f32 -0.5, %v816
        %v879 = vadd.f32 %v878, 1.0
        %v880 = vmul.f32 %v879, %v816
        %v881 = vand.u32 2147483647, %v816
        %vm882 = vcmp.lt.f32.partialorder %v881, 0.0004427343
        %v883 = vsel %vm882, %v880, %v877
        %v884 = vadd.f32 %v818, 1.0
        %v885 = vlog2.pop %v884
        %v886 = vmul.f32 %v885, 0.6931472
        %v887 = vmul.f32 -0.5, %v818
        %v888 = vadd.f32 %v887, 1.0
        %v889 = vmul.f32 %v888, %v818
        %v890 = vand.u32 2147483647, %v818
        %vm891 = vcmp.lt.f32.partialorder %v890, 0.0004427343
        %v892 = vsel %vm891, %v889, %v886
        %v893 = vadd.f32 %v820, 1.0
        %v894 = vlog2.pop %v893
        %v895 = vmul.f32 %v894, 0.6931472
        %v896 = vmul.f32 -0.5, %v820
        %v897 = vadd.f32 %v896, 1.0
        %v898 = vmul.f32 %v897, %v820
        %v899 = vand.u32 2147483647, %v820
        %vm900 = vcmp.lt.f32.partialorder %v899, 0.0004427343
        %v901 = vsel %vm900, %v898, %v895
        %v902 = vadd.f32 %v822, 1.0
        %v903 = vlog2.pop %v902
        %v904 = vmul.f32 %v903, 0.6931472
        %v905 = vmul.f32 -0.5, %v822
        %v906 = vadd.f32 %v905, 1.0
        %v907 = vmul.f32 %v906, %v822
        %v908 = vand.u32 2147483647, %v822
        %vm909 = vcmp.lt.f32.partialorder %v908, 0.0004427343
        %v910 = vsel %vm909, %v907, %v904
        %v911 = vadd.f32 %v824, 1.0
        %v912 = vlog2.pop %v911
        %v913 = vmul.f32 %v912, 0.6931472
        %v914 = vmul.f32 -0.5, %v824
        %v915 = vadd.f32 %v914, 1.0
        %v916 = vmul.f32 %v915, %v824
        %v917 = vand.u32 2147483647, %v824
        %vm918 = vcmp.lt.f32.partialorder %v917, 0.0004427343
        %v919 = vsel %vm918, %v916, %v913
        %v920 = vadd.f32 %v826, 1.0
        %v921 = vlog2.pop %v920
        %v922 = vmul.f32 %v921, 0.6931472
        %v923 = vmul.f32 -0.5, %v826
        %v924 = vadd.f32 %v923, 1.0
        %v925 = vmul.f32 %v924, %v826
        %v926 = vand.u32 2147483647, %v826
        %vm927 = vcmp.lt.f32.partialorder %v926, 0.0004427343
        %v928 = vsel %vm927, %v925, %v922
        %v929 = vadd.f32 %v828, 1.0
        %v930 = vlog2.pop %v929
        %v931 = vmul.f32 %v930, 0.6931472
        %v932 = vmul.f32 -0.5, %v828
        %v933 = vadd.f32 %v932, 1.0
        %v934 = vmul.f32 %v933, %v828
        %v935 = vand.u32 2147483647, %v828
        %vm936 = vcmp.lt.f32.partialorder %v935, 0.0004427343
        %v937 = vsel %vm936, %v934, %v931
        %v938 = vadd.f32 %v830, 1.0
        %v939 = vlog2.pop %v938
        %v940 = vmul.f32 %v939, 0.6931472
        %v941 = vmul.f32 -0.5, %v830
        %v942 = vadd.f32 %v941, 1.0
        %v943 = vmul.f32 %v942, %v830
        %v944 = vand.u32 2147483647, %v830
        %vm945 = vcmp.lt.f32.partialorder %v944, 0.0004427343
        %v946 = vsel %vm945, %v943, %v940
        %v947 = vadd.f32 %v832, 1.0
        %v948 = vlog2.pop %v947
        %v949 = vmul.f32 %v948, 0.6931472
        %v950 = vmul.f32 -0.5, %v832
        %v951 = vadd.f32 %v950, 1.0
        %v952 = vmul.f32 %v951, %v832
        %v953 = vand.u32 2147483647, %v832
        %vm954 = vcmp.lt.f32.partialorder %v953, 0.0004427343
        %v955 = vsel %vm954, %v952, %v949
        %v956 = vadd.f32 %v834, 1.0
        %v957 = vlog2.pop %v956
        %v958 = vmul.f32 %v957, 0.6931472
        %v959 = vmul.f32 -0.5, %v834
        %v960 = vadd.f32 %v959, 1.0
        %v961 = vmul.f32 %v960, %v834
        %v962 = vand.u32 2147483647, %v834
        %vm963 = vcmp.lt.f32.partialorder %v962, 0.0004427343
        %v964 = vsel %vm963, %v961, %v958
        %v965 = vadd.f32 %v836, 1.0
        %v966 = vlog2.pop %v965
        %v967 = vmul.f32 %v966, 0.6931472
        %v968 = vmul.f32 -0.5, %v836
        %v969 = vadd.f32 %v968, 1.0
        %v970 = vmul.f32 %v969, %v836
        %v971 = vand.u32 2147483647, %v836
        %vm972 = vcmp.lt.f32.partialorder %v971, 0.0004427343
        %v973 = vsel %vm972, %v970, %v967
        %v974 = vadd.f32 %v838, 1.0
        %v975 = vlog2.pop %v974
        %v976 = vmul.f32 %v975, 0.6931472
        %v977 = vmul.f32 -0.5, %v838
        %v978 = vadd.f32 %v977, 1.0
        %v979 = vmul.f32 %v978, %v838
        %v980 = vand.u32 2147483647, %v838
        %vm981 = vcmp.lt.f32.partialorder %v980, 0.0004427343
        %v982 = vsel %vm981, %v979, %v976
        %v983 = vadd.f32 %v759, %v847
        %v984 = vadd.f32 %v760, %v856
        %v985 = vadd.f32 %v761, %v865
        %v986 = vadd.f32 %v762, %v874
        %v987 = vadd.f32 %v763, %v883
        %v988 = vadd.f32 %v764, %v892
        %v989 = vadd.f32 %v765, %v901
        %v990 = vadd.f32 %v766, %v910
        %v991 = vadd.f32 %v767, %v919
        %v992 = vadd.f32 %v768, %v928
        %v993 = vadd.f32 %v769, %v937
        %v994 = vadd.f32 %v770, %v946
        %v995 = vadd.f32 %v771, %v955
        %v996 = vadd.f32 %v772, %v964
        %v997 = vadd.f32 %v773, %v973
        %v998 = vadd.f32 %v774, %v982
        %v1015 = vlaneseq
        %v1016 = vand.u32 %v1015, 127
        %v1017 = vlaneseq
        %v1018 = vshrl.u32 %v1017, 7
        %v1019 = vsub.s32 %v1016, %v1018
        %v1020 = vrot.slane %v983, %v1019
        %v1021 = vadd.s32 %v1016, 4294967288
        %v1022 = vlaneseq
        %v1023 = vshrl.u32 %v1022, 7
        %v1024 = vsub.s32 %v1021, %v1023
        %v1025 = vrot.slane %v984, %v1024
        %vm1026 = vcmask 130112
        %v1027 = vsel %vm1026, %v1025, %v1020
        %v1028 = vadd.s32 %v1016, 4294967280
        %v1029 = vlaneseq
        %v1030 = vshrl.u32 %v1029, 7
        %v1031 = vsub.s32 %v1028, %v1030
        %v1032 = vrot.slane %v985, %v1031
        %vm1033 = vcmask 195712
        %v1034 = vsel %vm1033, %v1032, %v1027
        %v1035 = vadd.s32 %v1016, 4294967272
        %v1036 = vlaneseq
        %v1037 = vshrl.u32 %v1036, 7
        %v1038 = vsub.s32 %v1035, %v1037
        %v1039 = vrot.slane %v986, %v1038
        %vm1040 = vcmask 261312
        %v1041 = vsel %vm1040, %v1039, %v1034
        %v1042 = vadd.s32 %v1016, 4294967264
        %v1043 = vlaneseq
        %v1044 = vshrl.u32 %v1043, 7
        %v1045 = vsub.s32 %v1042, %v1044
        %v1046 = vrot.slane %v987, %v1045
        %vm1047 = vcmask 326912
        %v1048 = vsel %vm1047, %v1046, %v1041
        %v1049 = vadd.s32 %v1016, 4294967256
        %v1050 = vlaneseq
        %v1051 = vshrl.u32 %v1050, 7
        %v1052 = vsub.s32 %v1049, %v1051
        %v1053 = vrot.slane %v988, %v1052
        %vm1054 = vcmask 392512
        %v1055 = vsel %vm1054, %v1053, %v1048
        %v1056 = vadd.s32 %v1016, 4294967248
        %v1057 = vlaneseq
        %v1058 = vshrl.u32 %v1057, 7
        %v1059 = vsub.s32 %v1056, %v1058
        %v1060 = vrot.slane %v989, %v1059
        %vm1061 = vcmask 458112
        %v1062 = vsel %vm1061, %v1060, %v1055
        %v1063 = vadd.s32 %v1016, 4294967240
        %v1064 = vlaneseq
        %v1065 = vshrl.u32 %v1064, 7
        %v1066 = vsub.s32 %v1063, %v1065
        %v1067 = vrot.slane %v990, %v1066
        %vm1068 = vcmask 523712
        %v1069 = vsel %vm1068, %v1067, %v1062
        %v1070 = vadd.s32 %v1016, 4294967232
        %v1071 = vlaneseq
        %v1072 = vshrl.u32 %v1071, 7
        %v1073 = vsub.s32 %v1070, %v1072
        %v1074 = vrot.slane %v991, %v1073
        %vm1075 = vcmask 589312
        %v1076 = vsel %vm1075, %v1074, %v1069
        %v1077 = vadd.s32 %v1016, 4294967224
        %v1078 = vlaneseq
        %v1079 = vshrl.u32 %v1078, 7
        %v1080 = vsub.s32 %v1077, %v1079
        %v1081 = vrot.slane %v992, %v1080
        %vm1082 = vcmask 654912
        %v1083 = vsel %vm1082, %v1081, %v1076
        %v1084 = vadd.s32 %v1016, 4294967216
        %v1085 = vlaneseq
        %v1086 = vshrl.u32 %v1085, 7
        %v1087 = vsub.s32 %v1084, %v1086
        %v1088 = vrot.slane %v993, %v1087
        %vm1089 = vcmask 720512
        %v1090 = vsel %vm1089, %v1088, %v1083
        %v1091 = vadd.s32 %v1016, 4294967208
        %v1092 = vlaneseq
        %v1093 = vshrl.u32 %v1092, 7
        %v1094 = vsub.s32 %v1091, %v1093
        %v1095 = vrot.slane %v994, %v1094
        %vm1096 = vcmask 786112
        %v1097 = vsel %vm1096, %v1095, %v1090
        %v1098 = vadd.s32 %v1016, 4294967200
        %v1099 = vlaneseq
        %v1100 = vshrl.u32 %v1099, 7
        %v1101 = vsub.s32 %v1098, %v1100
        %v1102 = vrot.slane %v995, %v1101
        %vm1103 = vcmask 851712
        %v1104 = vsel %vm1103, %v1102, %v1097
        %v1105 = vadd.s32 %v1016, 4294967192
        %v1106 = vlaneseq
        %v1107 = vshrl.u32 %v1106, 7
        %v1108 = vsub.s32 %v1105, %v1107
        %v1109 = vrot.slane %v996, %v1108
        %vm1110 = vcmask 917312
        %v1111 = vsel %vm1110, %v1109, %v1104
        %v1112 = vadd.s32 %v1016, 4294967184
        %v1113 = vlaneseq
        %v1114 = vshrl.u32 %v1113, 7
        %v1115 = vsub.s32 %v1112, %v1114
        %v1116 = vrot.slane %v997, %v1115
        %vm1117 = vcmask 982912
        %v1118 = vsel %vm1117, %v1116, %v1111
        %v1119 = vadd.s32 %v1016, 4294967176
        %v1120 = vlaneseq
        %v1121 = vshrl.u32 %v1120, 7
        %v1122 = vsub.s32 %v1119, %v1121
        %v1123 = vrot.slane %v998, %v1122
        %vm1124 = vcmask 1048512
        %v1125 = vsel %vm1124, %v1123, %v1118
        %1127 = vst [vmem:[%s284] sm:$0x1] %v1125
        %s1128 = sand.u32 %s182, 1
        %s1129 = scalar_lea.sflag [#allocation4], %s1128
        %s1130 = sand.u32 %s182, 1
        %s1131 = scalar_lea.vmem [#allocation3], %s1130
        // Predicated region
        $region49: #{uncertainty_mlp.1} parent=47 // pred_check
          %p1132 = pneg %p192
        $region50: #{uncertainty_mlp.1} parent=47 // pred_check_branch
          %1134 = sbr.rel (%p1132) target = $region52
        $region51: #{uncertainty_mlp.1} parent=47 // pred_region
          %s1136 = ssub.s32 16, 16
          %1137 = vsyncadd %s1129, %s1136
          %s1138 = smul.addr %s22, 16
          %s1139 = scalar_lea.hbm %s7, %s1138
          %s1141 = sshll.u32 %s1131, 4
          %s1142 = int_to_ptr.vmem [resolvable:$true] %s1141
          %1144 = dma.vmem_to_hbm [thread:$0]  %s1142, 16, %s1139, %s1129
        $region52: #{uncertainty_mlp.1} parent=47 // pred_fallthru
          _
      $region48: #{uncertainty_mlp.1} parent=5 // pred_fallthru
        _
      %p1145 = scmp.le.s32.totalorder 2, %s17
      // Predicated region
      $region53: #{uncertainty_mlp.1} parent=5 // pred_check
        %p1146 = pneg %p1145
      $region54: #{uncertainty_mlp.1} parent=5 // pred_check_branch
        %1148 = sbr.rel (%p1146) target = $region56
      $region55: #{uncertainty_mlp.1} parent=5 // pred_region
        %s1149 = ssub.s32 %s17, 2
        // Predicated region
        $region57: #{uncertainty_mlp.1} parent=55 // pred_check
          %p1150 = pneg %p198
        $region58: #{uncertainty_mlp.1} parent=55 // pred_check_branch
          %1152 = sbr.rel (%p1150) target = $region60
        $region59: #{uncertainty_mlp.1} parent=55 // pred_region
          %s1153 = sand.u32 %s183, 1
          %s1154 = scalar_lea.sflag [#allocation4], %s1153
          %s1155 = sand.u32 %s183, 1
          %s1156 = scalar_lea.vmem [#allocation3], %s1155
          %1157 = dma.done %s1154, 16
        $region60: #{uncertainty_mlp.1} parent=55 // pred_fallthru
          _
      $region56: #{uncertainty_mlp.1} parent=5 // pred_fallthru
        _
    $region6: #{uncertainty_mlp.1} parent=1 // loop_footer
      %s21 = sadd.s32 1, %s17
    $region7: #{uncertainty_mlp.1} parent=1 // loop_footer_branch
      %16 = sbr.rel target = $region3
    $region8: #{uncertainty_mlp.1} parent=1 // loop_exit
      _
    %1158 = vsyncpa [#allocation4], 1
    %s1159 = scalar_lea.sflag [#allocation4], 1
    %1160 = vsyncpa %s1159, 1

</llo_original>
